<compile_context>
chip_gen: v7x
topology: tpu7x:2x2x1
jax: 0.10.0
libtpu: 0.0.40
codegen_flags: <defaults>
</compile_context>

<pallas_src>
import functools

import jax
import jax.numpy as jnp
from jax import lax
from jax.experimental import pallas as pl
from jax.experimental.pallas import tpu as pltpu

N_LAYERS = 2
EPS = 1e-6

# bf16 operands on the MXU (v6e/v7x are bf16-native; f32 matmul is multi-pass
# emulation).  Accumulation stays f32 via preferred_element_type and the
# residual x is carried in f32 across the layer loop.
MATMUL_DTYPE = jnp.bfloat16


def _round_up(x, m):
    return (x + m - 1) // m * m


def _cdiv(a, b):
    return -(-a // b)


def decoder_kernel(y_ref, x_ref, w1_ref, w2c_ref, bc_ref, a2_ref, b2_ref,
                   o_ref, *, d_model, n_layers):
    # Residual x carried in f32 across the serial layer chain.
    x = x_ref[...].astype(jnp.float32)                 # (TM, Dp)
    dp = x.shape[-1]

    # Hoisted, loop-invariant y contribution: one wide bf16 MXU matmul off the
    # serial dependence chain instead of n_layers small (TM,Dp)@(Dp,Dp) dots.
    yc = jnp.dot(y_ref[...], w2c_ref[...],
                 preferred_element_type=jnp.float32) + bc_ref[...]   # (TM, N*Dp) f32

    # N stacked residual decoder layers (statically unrolled; bf16 MXU, f32 acc).
    # TODO(synk): stands in for the undefined per-layer `layer` module.
    for i in range(n_layers):
        x = x + (jnp.dot(x.astype(MATMUL_DTYPE), w1_ref[i],
                         preferred_element_type=jnp.float32)
                 + yc[:, i * dp:(i + 1) * dp])

    # LayerNorm with exact PyTorch semantics: unbiased std (divide by d-1), eps
    # added to the std.  Padded lanes (>= d_model) are exactly zero throughout
    # (zero-padded x/y/W/b), so the row sum is already correct; the centered
    # term is masked so padding doesn't pollute the variance or the output.
    # (d_model == 1 gives NaN, matching torch.std's unbiased behavior.)
    lane = lax.broadcasted_iota(jnp.int32, (1, dp), 1)
    valid = lane < d_model
    mean = jnp.sum(x, axis=-1, keepdims=True) * (1.0 / d_model)
    centered = jnp.where(valid, x - mean, 0.0)
    var_unb = jnp.sum(centered * centered, axis=-1, keepdims=True) * (1.0 / (d_model - 1))
    # Exact divide (not approx reciprocal): (TM,1)-wide, off the MXU critical path.
    inv = 1.0 / (jnp.sqrt(var_unb) + EPS)
    o_ref[...] = (a2_ref[...] * centered * inv + b2_ref[...]).astype(o_ref.dtype)


def prepare_decoder_params(w1, w2, b, a2, b2):
    """One-time parameter packaging (pad to lane multiple, cast to bf16, concat).

    Hoisted out of the per-call forward so the O(N*D^2) repackaging HBM traffic
    is not paid on every call.
    """
    n, d, _ = w1.shape
    assert n == N_LAYERS
    dp = _round_up(d, 128)                               # lane-dense last dim
    f32 = jnp.float32
    w1p = (jnp.zeros((N_LAYERS, dp, dp), MATMUL_DTYPE)
           .at[:, :d, :d].set(w1.astype(MATMUL_DTYPE)))
    w2p = (jnp.zeros((N_LAYERS, dp, dp), MATMUL_DTYPE)
           .at[:, :d, :d].set(w2.astype(MATMUL_DTYPE)))
    w2c = jnp.concatenate([w2p[i] for i in range(N_LAYERS)], axis=1)   # (dp, N*dp)
    bc = (jnp.zeros((N_LAYERS, dp), f32).at[:, :d].set(b.astype(f32))
          .reshape(1, N_LAYERS * dp))
    a2p = jnp.zeros((1, dp), f32).at[0, :d].set(a2.astype(f32))
    b2p = jnp.zeros((1, dp), f32).at[0, :d].set(b2.astype(f32))
    return dict(w1=w1p, w2c=w2c, bc=bc, a2=a2p, b2=b2p, d_model=d, dp=dp)


def decoder_forward(y, x, params):
    """y, x: (B, S, D); params: output of prepare_decoder_params."""
    B, S, D = x.shape
    assert D == params["d_model"]
    dp = params["dp"]
    M = B * S
    mm_bytes = jnp.dtype(MATMUL_DTYPE).itemsize
    out_bytes = jnp.dtype(x.dtype).itemsize

    # Per-generation VMEM budget (v5e/v6e ~128 MiB, v7x 64 MiB per TensorCore).
    try:
        vmem_cap = int(pltpu.get_tpu_info().vmem_capacity_bytes)
    except Exception:
        vmem_cap = 64 << 20        # conservative (v7x per-core)
    budget = vmem_cap * 3 // 4

    # Single-buffered resident params (see pl.Buffered(1) below).
    w_bytes = 2 * N_LAYERS * dp * dp * mm_bytes + (N_LAYERS * dp + 2 * dp) * 4
    # TODO(synk): if w_bytes ever exceeds ~half the per-core VMEM (very large D),
    # stream W1/W2 tiles from HBM (pltpu.emit_pipeline over a K/N grid axis)
    # instead of keeping the full stacks resident.

    def working_set(tm):
        io = 2 * 2 * tm * dp * mm_bytes            # double-buffered x, y tiles
        out = 2 * tm * dp * out_bytes              # double-buffered out tile
        yc = tm * N_LAYERS * dp * 4                # f32 hoisted y-contribution
        xres = tm * dp * 4                         # f32 residual live value
        return io + out + yc + xres + w_bytes

    # Largest multiple-of-16 row tile (bf16 sublane packing is (16,128)) whose
    # full working set -- including resident weights and the yc temp -- fits.
    tm = 1024
    while tm > 16 and working_set(tm) > budget:
        tm //= 2
    # Keep >= ~4 row tiles so ("parallel",) actually shards across v7x's 2 TCs
    # and the DMA pipeline has something to overlap with.
    tm = min(tm, max(16, _round_up(_cdiv(M, 4), 16)))
    m_pad = _round_up(M, tm)

    # Skip the padded HBM activation copies when shapes already line up.
    x_flat = x.reshape(M, D)
    y_flat = y.reshape(M, D)
    if D == dp and m_pad == M:
        x2 = x_flat.astype(MATMUL_DTYPE)
        y2 = y_flat.astype(MATMUL_DTYPE)
    else:
        x2 = (jnp.zeros((m_pad, dp), MATMUL_DTYPE)
              .at[:M, :D].set(x_flat.astype(MATMUL_DTYPE)))
        y2 = (jnp.zeros((m_pad, dp), MATMUL_DTYPE)
              .at[:M, :D].set(y_flat.astype(MATMUL_DTYPE)))

    row_spec = pl.BlockSpec((tm, dp), lambda i: (i, 0))

    def resident(shape):
        idx = lambda i: tuple(0 for _ in shape)
        try:
            # Constant index_map across the grid -> single-buffer the resident
            # parameters to halve their VMEM footprint.
            return pl.BlockSpec(shape, idx, pipeline_mode=pl.Buffered(1))
        except TypeError:
            return pl.BlockSpec(shape, idx)

    vmem_limit = int(min(working_set(tm) + (8 << 20), vmem_cap * 9 // 10))
    vmem_limit = max(vmem_limit, 16 << 20)

    out = pl.pallas_call(
        functools.partial(decoder_kernel, d_model=D, n_layers=N_LAYERS),
        out_shape=jax.ShapeDtypeStruct((m_pad, dp), x.dtype),
        grid=(m_pad // tm,),
        in_specs=[
            row_spec,                                  # y   (pipelined, bf16)
            row_spec,                                  # x   (pipelined, bf16)
            resident((N_LAYERS, dp, dp)),              # W1 stack  (VMEM-resident)
            resident((dp, N_LAYERS * dp)),             # W2 concat (VMEM-resident)
            resident((1, N_LAYERS * dp)),              # bias concat (f32)
            resident((1, dp)),                         # a_2 (f32)
            resident((1, dp)),                         # b_2 (f32)
        ],
        out_specs=row_spec,
        compiler_params=pltpu.CompilerParams(
            dimension_semantics=("parallel",),         # shard row tiles across TCs
            vmem_limit_bytes=vmem_limit,
        ),
    )(y2, x2, params["w1"], params["w2c"], params["bc"], params["a2"], params["b2"])

    return out[:M, :D].reshape(B, S, D)


def decoder_reference(y, x, w1, w2, b, a2, b2):
    """Pure-JAX f32 reference with identical semantics to the PyTorch module."""
    xf = x.astype(jnp.float32)
    yf = y.astype(jnp.float32)
    for i in range(N_LAYERS):
        xf = xf + xf @ w1[i] + yf @ w2[i] + b[i]
    d = xf.shape[-1]
    mean = jnp.mean(xf, axis=-1, keepdims=True)
    c = xf - mean
    std = jnp.sqrt(jnp.sum(c * c, axis=-1, keepdims=True) / (d - 1))
    return a2 * c / (std + EPS) + b2


if __name__ == "__main__":
    B, S, D = 2, 8, 32

    key = jax.random.PRNGKey(0)
    k_y, k_x, k_w1, k_w2, k_b = jax.random.split(key, 5)

    y = jax.random.normal(k_y, (B, S, D), dtype=jnp.float32)
    x = jax.random.normal(k_x, (B, S, D), dtype=jnp.float32)

    # Deterministic synthetic parameters (small scale keeps activations tame).
    w1 = 0.05 * jax.random.normal(k_w1, (N_LAYERS, D, D), dtype=jnp.float32)
    w2 = 0.05 * jax.random.normal(k_w2, (N_LAYERS, D, D), dtype=jnp.float32)
    b = 0.01 * jax.random.normal(k_b, (N_LAYERS, D), dtype=jnp.float32)
    a2 = jnp.ones((D,), dtype=jnp.float32)    # LayerNorm a_2 init (torch.ones)
    b2 = jnp.zeros((D,), dtype=jnp.float32)   # LayerNorm b_2 init (torch.zeros)

    params = prepare_decoder_params(w1, w2, b, a2, b2)   # one-time packaging
    out = decoder_forward(y, x, params)
    out = jax.block_until_ready(out)

    ref = decoder_reference(y, x, w1, w2, b, a2, b2)
    assert out.shape == (B, S, D)
    # Tolerance accounts for bf16 MXU operands (accumulation stays f32,
    # residual carried in f32, exact LayerNorm divide).
    assert jnp.allclose(out, ref, atol=3e-2, rtol=3e-2), "mismatch vs reference"

    print("KERNEL_OK")
</pallas_src>

<mosaic_0001>
module attributes {stable_mosaic.version = 11 : i64} {
  func.func @decoder_kernel(%arg0: i32, %arg1: memref<16x128xbf16, #tpu.memory_space<vmem>>, %arg2: memref<16x128xbf16, #tpu.memory_space<vmem>>, %arg3: memref<2x128x128xbf16, #tpu.memory_space<vmem>>, %arg4: memref<128x256xbf16, #tpu.memory_space<vmem>>, %arg5: memref<1x256xf32, #tpu.memory_space<vmem>>, %arg6: memref<1x128xf32, #tpu.memory_space<vmem>>, %arg7: memref<1x128xf32, #tpu.memory_space<vmem>>, %arg8: memref<16x128xf32, #tpu.memory_space<vmem>>) attributes {dimension_semantics = [#tpu.dimension_semantics<parallel>], iteration_bounds = array<i64: 1>, scalar_prefetch = 0 : i64, scratch_operands = 0 : i64, tpu.core_type = #tpu.core_type<tc>, window_params = [{transform_indices = @transform_0, window_bounds = array<i64: 16, 128>}, {transform_indices = @transform_1, window_bounds = array<i64: 16, 128>}, {pipeline_mode = #tpu.pipeline_mode<synchronous>, transform_indices = @transform_2, window_bounds = array<i64: 2, 128, 128>}, {pipeline_mode = #tpu.pipeline_mode<synchronous>, transform_indices = @transform_3, window_bounds = array<i64: 128, 256>}, {pipeline_mode = #tpu.pipeline_mode<synchronous>, transform_indices = @transform_4, window_bounds = array<i64: 1, 256>}, {pipeline_mode = #tpu.pipeline_mode<synchronous>, transform_indices = @transform_5, window_bounds = array<i64: 1, 128>}, {pipeline_mode = #tpu.pipeline_mode<synchronous>, transform_indices = @transform_6, window_bounds = array<i64: 1, 128>}, {transform_indices = @transform_7, window_bounds = array<i64: 16, 128>}]} {
    %c0 = arith.constant 0 : index
    %c0_0 = arith.constant 0 : index
    %0 = vector.load %arg2[%c0, %c0_0] : memref<16x128xbf16, #tpu.memory_space<vmem>>, vector<16x128xbf16>
    %1 = arith.extf %0 : vector<16x128xbf16> to vector<16x128xf32>
    %c0_1 = arith.constant 0 : index
    %c0_2 = arith.constant 0 : index
    %2 = vector.load %arg1[%c0_1, %c0_2] : memref<16x128xbf16, #tpu.memory_space<vmem>>, vector<16x128xbf16>
    %c0_3 = arith.constant 0 : index
    %c0_4 = arith.constant 0 : index
    %3 = vector.load %arg4[%c0_3, %c0_4] : memref<128x256xbf16, #tpu.memory_space<vmem>>, vector<128x256xbf16>
    %cst = arith.constant dense<0.000000e+00> : vector<16x256xf32>
    %4 = tpu.matmul %2, %3, %cst {dimension_numbers = #tpu.dot_dimension_numbers<[1], [0], [0], [1], [0, 0, 1, 1], [], []>} : vector<16x128xbf16>, vector<128x256xbf16>, vector<16x256xf32> -> vector<16x256xf32>
    %c0_5 = arith.constant 0 : index
    %c0_6 = arith.constant 0 : index
    %5 = vector.load %arg5[%c0_5, %c0_6] : memref<1x256xf32, #tpu.memory_space<vmem>>, vector<1x256xf32>
    %6 = vector.broadcast %5 : vector<1x256xf32> to vector<16x256xf32>
    %7 = arith.addf %4, %6 : vector<16x256xf32>
    %8 = arith.truncf %1 : vector<16x128xf32> to vector<16x128xbf16>
    %c0_7 = arith.constant 0 : index
    %c0_8 = arith.constant 0 : index
    %c0_9 = arith.constant 0 : index
    %9 = vector.load %arg3[%c0_7, %c0_8, %c0_9] : memref<2x128x128xbf16, #tpu.memory_space<vmem>>, vector<1x128x128xbf16>
    %10 = vector.shape_cast %9 : vector<1x128x128xbf16> to vector<128x128xbf16>
    %cst_10 = arith.constant dense<0.000000e+00> : vector<16x128xf32>
    %11 = tpu.matmul %8, %10, %cst_10 {dimension_numbers = #tpu.dot_dimension_numbers<[1], [0], [0], [1], [0, 0, 1, 1], [], []>} : vector<16x128xbf16>, vector<128x128xbf16>, vector<16x128xf32> -> vector<16x128xf32>
    %12 = vector.extract_strided_slice %7 {offsets = [0, 0], sizes = [16, 128], strides = [1, 1]} : vector<16x256xf32> to vector<16x128xf32>
    %13 = arith.addf %11, %12 : vector<16x128xf32>
    %14 = arith.addf %1, %13 : vector<16x128xf32>
    %15 = arith.truncf %14 : vector<16x128xf32> to vector<16x128xbf16>
    %c1 = arith.constant 1 : index
    %c0_11 = arith.constant 0 : index
    %c0_12 = arith.constant 0 : index
    %16 = vector.load %arg3[%c1, %c0_11, %c0_12] : memref<2x128x128xbf16, #tpu.memory_space<vmem>>, vector<1x128x128xbf16>
    %17 = vector.shape_cast %16 : vector<1x128x128xbf16> to vector<128x128xbf16>
    %cst_13 = arith.constant dense<0.000000e+00> : vector<16x128xf32>
    %18 = tpu.matmul %15, %17, %cst_13 {dimension_numbers = #tpu.dot_dimension_numbers<[1], [0], [0], [1], [0, 0, 1, 1], [], []>} : vector<16x128xbf16>, vector<128x128xbf16>, vector<16x128xf32> -> vector<16x128xf32>
    %19 = vector.extract_strided_slice %7 {offsets = [0, 128], sizes = [16, 128], strides = [1, 1]} : vector<16x256xf32> to vector<16x128xf32>
    %20 = arith.addf %18, %19 : vector<16x128xf32>
    %21 = arith.addf %14, %20 : vector<16x128xf32>
    %22 = tpu.iota {dimensions = array<i32: 1>} : vector<1x128xi32>
    %c32_i32 = arith.constant 32 : i32
    %23 = vector.broadcast %c32_i32 : i32 to vector<1x128xi32>
    %24 = arith.cmpi slt, %22, %23 : vector<1x128xi32>
    %cst_14 = arith.constant dense<0.000000e+00> : vector<16xf32>
    %25 = vector.multi_reduction <add>, %21, %cst_14 [1] : vector<16x128xf32> to vector<16xf32>
    %26 = vector.shape_cast %25 : vector<16xf32> to vector<16x1xf32>
    %cst_15 = arith.constant 3.125000e-02 : f32
    %27 = vector.broadcast %cst_15 : f32 to vector<16x1xf32>
    %28 = arith.mulf %26, %27 : vector<16x1xf32>
    %29 = vector.broadcast %28 : vector<16x1xf32> to vector<16x128xf32>
    %30 = arith.subf %21, %29 : vector<16x128xf32>
    %cst_16 = arith.constant 0.000000e+00 : f32
    %31 = vector.shape_cast %24 : vector<1x128xi1> to vector<1x128xi1>
    %32 = vector.broadcast %31 : vector<1x128xi1> to vector<16x128xi1>
    %33 = vector.broadcast %cst_16 : f32 to vector<16x128xf32>
    %34 = arith.select %32, %30, %33 : vector<16x128xi1>, vector<16x128xf32>
    %35 = arith.mulf %34, %34 : vector<16x128xf32>
    %cst_17 = arith.constant dense<0.000000e+00> : vector<16xf32>
    %36 = vector.multi_reduction <add>, %35, %cst_17 [1] : vector<16x128xf32> to vector<16xf32>
    %37 = vector.shape_cast %36 : vector<16xf32> to vector<16x1xf32>
    %cst_18 = arith.constant 0.0322580636 : f32
    %38 = vector.broadcast %cst_18 : f32 to vector<16x1xf32>
    %39 = arith.mulf %37, %38 : vector<16x1xf32>
    %40 = math.sqrt %39 : vector<16x1xf32>
    %cst_19 = arith.constant 9.99999997E-7 : f32
    %41 = vector.broadcast %cst_19 : f32 to vector<16x1xf32>
    %42 = arith.addf %40, %41 : vector<16x1xf32>
    %cst_20 = arith.constant 1.000000e+00 : f32
    %43 = vector.broadcast %cst_20 : f32 to vector<16x1xf32>
    %44 = arith.divf %43, %42 : vector<16x1xf32>
    %c0_21 = arith.constant 0 : index
    %c0_22 = arith.constant 0 : index
    %45 = vector.load %arg6[%c0_21, %c0_22] : memref<1x128xf32, #tpu.memory_space<vmem>>, vector<1x128xf32>
    %46 = vector.broadcast %45 : vector<1x128xf32> to vector<16x128xf32>
    %47 = arith.mulf %46, %34 : vector<16x128xf32>
    %48 = vector.broadcast %44 : vector<16x1xf32> to vector<16x128xf32>
    %49 = arith.mulf %47, %48 : vector<16x128xf32>
    %c0_23 = arith.constant 0 : index
    %c0_24 = arith.constant 0 : index
    %50 = vector.load %arg7[%c0_23, %c0_24] : memref<1x128xf32, #tpu.memory_space<vmem>>, vector<1x128xf32>
    %51 = vector.broadcast %50 : vector<1x128xf32> to vector<16x128xf32>
    %52 = arith.addf %49, %51 : vector<16x128xf32>
    %c0_25 = arith.constant 0 : index
    %c0_26 = arith.constant 0 : index
    %53 = vector.load %arg8[%c0_25, %c0_26] : memref<16x128xf32, #tpu.memory_space<vmem>>, vector<16x128xf32>
    tpu.vector_store %arg8[%c0_25, %c0_26], %52 {strides = array<i32>} : memref<16x128xf32, #tpu.memory_space<vmem>>, vector<16x128xf32>,
    return
  }
  func.func @transform_0(%arg0: i32) -> (i32, i32) {
    %c0_i32 = arith.constant 0 : i32
    %c0_i32_0 = arith.constant 0 : i32
    return %arg0, %c0_i32 : i32, i32
  }
  func.func @transform_1(%arg0: i32) -> (i32, i32) {
    %c0_i32 = arith.constant 0 : i32
    %c0_i32_0 = arith.constant 0 : i32
    return %arg0, %c0_i32 : i32, i32
  }
  func.func @transform_2(%arg0: i32) -> (i32, i32, i32) {
    %c0_i32 = arith.constant 0 : i32
    %c0_i32_0 = arith.constant 0 : i32
    %c0_i32_1 = arith.constant 0 : i32
    %c0_i32_2 = arith.constant 0 : i32
    return %c0_i32, %c0_i32_0, %c0_i32_1 : i32, i32, i32
  }
  func.func @transform_3(%arg0: i32) -> (i32, i32) {
    %c0_i32 = arith.constant 0 : i32
    %c0_i32_0 = arith.constant 0 : i32
    %c0_i32_1 = arith.constant 0 : i32
    return %c0_i32, %c0_i32_0 : i32, i32
  }
  func.func @transform_4(%arg0: i32) -> (i32, i32) {
    %c0_i32 = arith.constant 0 : i32
    %c0_i32_0 = arith.constant 0 : i32
    %c0_i32_1 = arith.constant 0 : i32
    return %c0_i32, %c0_i32_0 : i32, i32
  }
  func.func @transform_5(%arg0: i32) -> (i32, i32) {
    %c0_i32 = arith.constant 0 : i32
    %c0_i32_0 = arith.constant 0 : i32
    %c0_i32_1 = arith.constant 0 : i32
    return %c0_i32, %c0_i32_0 : i32, i32
  }
  func.func @transform_6(%arg0: i32) -> (i32, i32) {
    %c0_i32 = arith.constant 0 : i32
    %c0_i32_0 = arith.constant 0 : i32
    %c0_i32_1 = arith.constant 0 : i32
    return %c0_i32, %c0_i32_0 : i32, i32
  }
  func.func @transform_7(%arg0: i32) -> (i32, i32) {
    %c0_i32 = arith.constant 0 : i32
    %c0_i32_0 = arith.constant 0 : i32
    return %arg0, %c0_i32 : i32, i32
  }
}

</mosaic_0001>

<llo_original>
// kernel: tpu_custom_call.1
$region0: #{tpu_custom_call.1}
  #allocation0 [shape = 'u32[]', space=smem, size = 0x4, offset = 0x4, fixed_abs, tag = 'smem constant byte address 0x4 - core index']
  #allocation1 [shape = 'u32[144,128]{1,0:T(1,128)}', space=vmem, size = 0x12000, scoped, tag = 'internal scratch']
  %s0 = inlined_call_operand.hbm [shape: bf16[16,128], index: 0, kind: input, shape index: {}]
  %s1 = inlined_call_operand.hbm [shape: bf16[16,128], index: 1, kind: input, shape index: {}]
  %s2 = inlined_call_operand.hbm [shape: bf16[2,128,128], index: 2, kind: input, shape index: {}]
  %s3 = inlined_call_operand.hbm [shape: bf16[128,256], index: 3, kind: input, shape index: {}]
  %s4 = inlined_call_operand.vmem [shape: f32[1,256], index: 4, kind: input, shape index: {}]
  %s5 = inlined_call_operand.vmem [shape: f32[1,128], index: 5, kind: input, shape index: {}]
  %s6 = inlined_call_operand.vmem [shape: f32[1,128], index: 6, kind: input, shape index: {}]
  %s7 = inlined_call_operand.hbm [shape: f32[16,128], index: 7, kind: output, shape index: {}]
  %s8 = sld [smem:[#allocation0]]
  $region54: #{tpu_custom_call.1} parent=0
    _
  %s10 = ssub.s32 1, %s8
  %s11 = scalar_select 0, %s10, %s8
  $region1: #{tpu_custom_call.1} parent=0
    #allocation2 [shape = 'u8[4096]{0}', space=vmem, size = 0x1000, scoped, tag = 'input window, operand 0, single buffered']
    #allocation3 [shape = 's32[1]{0}', space=sflag, size = 0x4, scoped, tag = 'scoped memory for tpu_custom_call.1']
    #allocation4 [shape = 's32[1]{0}', space=sflag, size = 0x4, scoped, tag = 'scoped memory for tpu_custom_call.1']
    #allocation5 [shape = 'u8[4096]{0}', space=vmem, size = 0x1000, scoped, tag = 'input window, operand 1, single buffered']
    #allocation6 [shape = 's32[1]{0}', space=sflag, size = 0x4, scoped, tag = 'scoped memory for tpu_custom_call.1']
    #allocation7 [shape = 'u8[65536]{0}', space=vmem, size = 0x10000, scoped, tag = 'input window, operand 2, single buffered']
    #allocation8 [shape = 'u8[65536]{0}', space=vmem, size = 0x10000, scoped, tag = 'input window, operand 3, single buffered']
    #allocation9 [shape = 's32[1]{0}', space=sflag, size = 0x4, scoped, tag = 'scoped memory for tpu_custom_call.1']
    #allocation10 [shape = 'u8[8192]{0}', space=vmem, size = 0x2000, scoped, tag = 'output window, operand 0, single buffered']
    %12 = vsyncpa [#allocation3], 0
    %13 = vsyncpa [#allocation6], 0
    %14 = vsyncpa [#allocation9], 0
    %15 = vsyncpa [#allocation4], 0
    // Predicated region
    $region2: #{tpu_custom_call.1} parent=1 // pred_check
      _
    $region3: #{tpu_custom_call.1} parent=1 // pred_check_branch
      %17 = sbr.rel (0) target = $region5
    $region4: #{tpu_custom_call.1} parent=1 // pred_region
      %s19 = ssub.s32 128, 128
      %20 = vsyncadd [#allocation3], %s19
      %s21 = sshll.u32 [#allocation2], 4
      %s22 = int_to_ptr.vmem [resolvable:$true] %s21
      %27 = dma.hbm_to_vmem [thread:$0]  %s0, 128, %s22, [#allocation3], 64, 64, 4
    $region5: #{tpu_custom_call.1} parent=1 // pred_fallthru
      _
    // Predicated region
    $region6: #{tpu_custom_call.1} parent=1 // pred_check
      _
    $region7: #{tpu_custom_call.1} parent=1 // pred_check_branch
      %29 = sbr.rel (0) target = $region9
    $region8: #{tpu_custom_call.1} parent=1 // pred_region
      %s31 = ssub.s32 128, 128
      %32 = vsyncadd [#allocation6], %s31
      %s33 = sshll.u32 [#allocation5], 4
      %s34 = int_to_ptr.vmem [resolvable:$true] %s33
      %39 = dma.hbm_to_vmem [thread:$0]  %s1, 128, %s34, [#allocation6], 64, 64, 4
    $region9: #{tpu_custom_call.1} parent=1 // pred_fallthru
      _
    // Predicated region
    $region10: #{tpu_custom_call.1} parent=1 // pred_check
      _
    $region11: #{tpu_custom_call.1} parent=1 // pred_check_branch
      %41 = sbr.rel (0) target = $region13
    $region12: #{tpu_custom_call.1} parent=1 // pred_region
      %s43 = ssub.s32 2048, 2048
      %44 = vsyncadd [#allocation6], %s43
      %s45 = sshll.u32 [#allocation7], 4
      %s46 = int_to_ptr.vmem [resolvable:$true] %s45
      %51 = dma.hbm_to_vmem [thread:$0]  %s2, 2048, %s46, [#allocation6], 64, 64, 4
    $region13: #{tpu_custom_call.1} parent=1 // pred_fallthru
      _
    // Predicated region
    $region14: #{tpu_custom_call.1} parent=1 // pred_check
      _
    $region15: #{tpu_custom_call.1} parent=1 // pred_check_branch
      %53 = sbr.rel (0) target = $region17
    $region16: #{tpu_custom_call.1} parent=1 // pred_region
      %s55 = ssub.s32 2048, 2048
      %56 = vsyncadd [#allocation9], %s55
      %s57 = sshll.u32 [#allocation8], 4
      %s58 = int_to_ptr.vmem [resolvable:$true] %s57
      %63 = dma.hbm_to_vmem [thread:$0]  %s3, 2048, %s58, [#allocation9], 128, 128, 8
    $region17: #{tpu_custom_call.1} parent=1 // pred_fallthru
      _
    // Predicated region
    $region18: #{tpu_custom_call.1} parent=1 // pred_check
      _
    $region19: #{tpu_custom_call.1} parent=1 // pred_check_branch
      %65 = sbr.rel (0) target = $region21
    $region20: #{tpu_custom_call.1} parent=1 // pred_region
      _
    $region21: #{tpu_custom_call.1} parent=1 // pred_fallthru
      _
    // Predicated region
    $region22: #{tpu_custom_call.1} parent=1 // pred_check
      _
    $region23: #{tpu_custom_call.1} parent=1 // pred_check_branch
      %67 = sbr.rel (0) target = $region25
    $region24: #{tpu_custom_call.1} parent=1 // pred_region
      _
    $region25: #{tpu_custom_call.1} parent=1 // pred_fallthru
      _
    // Predicated region
    $region26: #{tpu_custom_call.1} parent=1 // pred_check
      _
    $region27: #{tpu_custom_call.1} parent=1 // pred_check_branch
      %69 = sbr.rel (0) target = $region29
    $region28: #{tpu_custom_call.1} parent=1 // pred_region
      _
    $region29: #{tpu_custom_call.1} parent=1 // pred_fallthru
      _
    // Predicated region
    $region30: #{tpu_custom_call.1} parent=1 // pred_check
      _
    $region31: #{tpu_custom_call.1} parent=1 // pred_check_branch
      %71 = sbr.rel (0) target = $region33
    $region32: #{tpu_custom_call.1} parent=1 // pred_region
      %72 = dma.done [#allocation3], 128
    $region33: #{tpu_custom_call.1} parent=1 // pred_fallthru
      _
    // Predicated region
    $region34: #{tpu_custom_call.1} parent=1 // pred_check
      _
    $region35: #{tpu_custom_call.1} parent=1 // pred_check_branch
      %74 = sbr.rel (0) target = $region37
    $region36: #{tpu_custom_call.1} parent=1 // pred_region
      %75 = dma.done [#allocation6], 128
    $region37: #{tpu_custom_call.1} parent=1 // pred_fallthru
      _
    // Predicated region
    $region38: #{tpu_custom_call.1} parent=1 // pred_check
      _
    $region39: #{tpu_custom_call.1} parent=1 // pred_check_branch
      %77 = sbr.rel (0) target = $region41
    $region40: #{tpu_custom_call.1} parent=1 // pred_region
      %78 = dma.done [#allocation6], 2048
    $region41: #{tpu_custom_call.1} parent=1 // pred_fallthru
      _
    // Predicated region
    $region42: #{tpu_custom_call.1} parent=1 // pred_check
      _
    $region43: #{tpu_custom_call.1} parent=1 // pred_check_branch
      %80 = sbr.rel (0) target = $region45
    $region44: #{tpu_custom_call.1} parent=1 // pred_region
      %81 = dma.done [#allocation9], 2048
    $region45: #{tpu_custom_call.1} parent=1 // pred_fallthru
      _
    %v83 = vld [vmem:[#allocation5] sm:$0xf]
    %v84 = vld [vmem:[#allocation5 + $0x4] sm:$0xf]
    %v85 = vunpack.c.l.bf16 %v83
    %v86 = vunpack.c.l.bf16 %v84
    %v87 = vld [vmem:[#allocation2] sm:$0xf]
    %v88 = vld [vmem:[#allocation2 + $0x4] sm:$0xf]
    %v89 = vld [vmem:[#allocation8] sm:$0xff]
    %v90 = vld [vmem:[#allocation8 + $0x8] sm:$0xff]
    %v91 = vld [vmem:[#allocation8 + $0x10] sm:$0xff]
    %v92 = vld [vmem:[#allocation8 + $0x18] sm:$0xff]
    %v93 = vld [vmem:[#allocation8 + $0x20] sm:$0xff]
    %v94 = vld [vmem:[#allocation8 + $0x28] sm:$0xff]
    %v95 = vld [vmem:[#allocation8 + $0x30] sm:$0xff]
    %v96 = vld [vmem:[#allocation8 + $0x38] sm:$0xff]
    %v97 = vld [vmem:[#allocation8 + $0x40] sm:$0xff]
    %v98 = vld [vmem:[#allocation8 + $0x48] sm:$0xff]
    %v99 = vld [vmem:[#allocation8 + $0x50] sm:$0xff]
    %v100 = vld [vmem:[#allocation8 + $0x58] sm:$0xff]
    %v101 = vld [vmem:[#allocation8 + $0x60] sm:$0xff]
    %v102 = vld [vmem:[#allocation8 + $0x68] sm:$0xff]
    %v103 = vld [vmem:[#allocation8 + $0x70] sm:$0xff]
    %v104 = vld [vmem:[#allocation8 + $0x78] sm:$0xff]
    %v105 = vld [vmem:[%s4] sm:$0x3]
    %v107 = vlaneseq
    %v108 = vshrl.u32 %v107, 7
    %v109 = vsub.s32 0, %v108
    %v110 = vrot.slane %v105, %v109
    %v111 = vlaneseq
    %v112 = vshrl.u32 %v111, 7
    %v113 = vsub.s32 1, %v112
    %v114 = vrot.slane %v105, %v113
    %v119 = vunpack.c.l.b16 %v87
    %v120 = vunpack.c.l.b16 %v88
    %v121 = vpack.c.b16 %v120, %v119
    %v139 = vunpack.c.l.b16 %v89
    %v140 = vunpack.c.h.b16 %v89
    %v141 = vunpack.c.l.b16 %v90
    %v142 = vunpack.c.h.b16 %v90
    %v143 = vunpack.c.l.b16 %v91
    %v144 = vunpack.c.h.b16 %v91
    %v145 = vunpack.c.l.b16 %v92
    %v146 = vunpack.c.h.b16 %v92
    %v147 = vunpack.c.l.b16 %v93
    %v148 = vunpack.c.h.b16 %v93
    %v149 = vunpack.c.l.b16 %v94
    %v150 = vunpack.c.h.b16 %v94
    %v151 = vunpack.c.l.b16 %v95
    %v152 = vunpack.c.h.b16 %v95
    %v153 = vunpack.c.l.b16 %v96
    %v154 = vunpack.c.h.b16 %v96
    %v155 = vunpack.c.l.b16 %v97
    %v156 = vunpack.c.h.b16 %v97
    %v157 = vunpack.c.l.b16 %v98
    %v158 = vunpack.c.h.b16 %v98
    %v159 = vunpack.c.l.b16 %v99
    %v160 = vunpack.c.h.b16 %v99
    %v161 = vunpack.c.l.b16 %v100
    %v162 = vunpack.c.h.b16 %v100
    %v163 = vunpack.c.l.b16 %v101
    %v164 = vunpack.c.h.b16 %v101
    %v165 = vunpack.c.l.b16 %v102
    %v166 = vunpack.c.h.b16 %v102
    %v167 = vunpack.c.l.b16 %v103
    %v168 = vunpack.c.h.b16 %v103
    %v169 = vunpack.c.l.b16 %v104
    %v170 = vunpack.c.h.b16 %v104
    %v171 = vpack.c.b16 %v141, %v139
    %v172 = vpack.c.b16 %v142, %v140
    %v173 = vpack.c.b16 %v145, %v143
    %v174 = vpack.c.b16 %v146, %v144
    %v175 = vpack.c.b16 %v149, %v147
    %v176 = vpack.c.b16 %v150, %v148
    %v177 = vpack.c.b16 %v153, %v151
    %v178 = vpack.c.b16 %v154, %v152
    %v179 = vpack.c.b16 %v157, %v155
    %v180 = vpack.c.b16 %v158, %v156
    %v181 = vpack.c.b16 %v161, %v159
    %v182 = vpack.c.b16 %v162, %v160
    %v183 = vpack.c.b16 %v165, %v163
    %v184 = vpack.c.b16 %v166, %v164
    %v185 = vpack.c.b16 %v169, %v167
    %v186 = vpack.c.b16 %v170, %v168
    %203 = vmatprep.subr.bf16.mxu0 %v172
    %204 = vmatpush1.bf16.msra.mxu0 %v171
    %205 = vmatprep.subr.bf16.mxu0 %v174
    %206 = vmatpush1.bf16.msra.mxu0 %v173
    %207 = vmatprep.subr.bf16.mxu0 %v176
    %208 = vmatpush1.bf16.msra.mxu0 %v175
    %209 = vmatprep.subr.bf16.mxu0 %v178
    %210 = vmatpush1.bf16.msra.mxu0 %v177
    %211 = vmatprep.subr.bf16.mxu0 %v180
    %212 = vmatpush1.bf16.msra.mxu0 %v179
    %213 = vmatprep.subr.bf16.mxu0 %v182
    %214 = vmatpush1.bf16.msra.mxu0 %v181
    %215 = vmatprep.subr.bf16.mxu0 %v184
    %216 = vmatpush1.bf16.msra.mxu0 %v183
    %217 = vmatprep.subr.bf16.mxu0 %v186
    %218 = vmatpush1.bf16.msra.mxu0 %v185
    %219 = vmatprep.subr.bf16.mxu0 0
    %220 = vmatpush1.bf16.msra.mxu0 0
    %221 = vmatprep.subr.bf16.mxu0 0
    %222 = vmatpush1.bf16.msra.mxu0 0
    %223 = vmatprep.subr.bf16.mxu0 0
    %224 = vmatpush1.bf16.msra.mxu0 0
    %225 = vmatprep.subr.bf16.mxu0 0
    %226 = vmatpush1.bf16.msra.mxu0 0
    %227 = vmatprep.subr.bf16.mxu0 0
    %228 = vmatpush1.bf16.msra.mxu0 0
    %229 = vmatprep.subr.bf16.mxu0 0
    %230 = vmatpush1.bf16.msra.mxu0 0
    %231 = vmatprep.subr.bf16.mxu0 0
    %232 = vmatpush1.bf16.msra.mxu0 0
    %233 = vmatprep.subr.bf16.mxu0 0
    %234 = vmatpush1.bf16.msra.mxu0 0
    %235 = vmatprep.mubr.bf16.mxu0 0
    %236 = vmatmul.mubr.bf16.gmra.mrb[0].mxu0 %v121
    %v237 = vpop.f32.mrb[0].mxu0
    %v238 = vadd.f32 %v110, %v237
    %v239 = vpop.f32.mrb[0].mxu0
    %v240 = vadd.f32 %v114, %v239
    %v241 = vpop.f32.mrb[0].mxu0
    %v242 = vadd.f32 %v110, %v241
    %v243 = vpop.f32.mrb[0].mxu0
    %v244 = vadd.f32 %v114, %v243
    %245 = vdwg.mxu0
    %v246 = vld [vmem:[#allocation7] sm:$0xf]
    %v247 = vld [vmem:[#allocation7 + $0x4] sm:$0xf]
    %v248 = vld [vmem:[#allocation7 + $0x8] sm:$0xf]
    %v249 = vld [vmem:[#allocation7 + $0xc] sm:$0xf]
    %v250 = vld [vmem:[#allocation7 + $0x10] sm:$0xf]
    %v251 = vld [vmem:[#allocation7 + $0x14] sm:$0xf]
    %v252 = vld [vmem:[#allocation7 + $0x18] sm:$0xf]
    %v253 = vld [vmem:[#allocation7 + $0x1c] sm:$0xf]
    %v254 = vld [vmem:[#allocation7 + $0x20] sm:$0xf]
    %v255 = vld [vmem:[#allocation7 + $0x24] sm:$0xf]
    %v256 = vld [vmem:[#allocation7 + $0x28] sm:$0xf]
    %v257 = vld [vmem:[#allocation7 + $0x2c] sm:$0xf]
    %v258 = vld [vmem:[#allocation7 + $0x30] sm:$0xf]
    %v259 = vld [vmem:[#allocation7 + $0x34] sm:$0xf]
    %v260 = vld [vmem:[#allocation7 + $0x38] sm:$0xf]
    %v261 = vld [vmem:[#allocation7 + $0x3c] sm:$0xf]
    %v264 = vunpack.c.l.b16 %v83
    %v265 = vunpack.c.l.b16 %v84
    %v266 = vpack.c.b16 %v265, %v264
    %v284 = vunpack.c.l.b16 %v246
    %v285 = vunpack.c.l.b16 %v247
    %v286 = vunpack.c.l.b16 %v248
    %v287 = vunpack.c.l.b16 %v249
    %v288 = vunpack.c.l.b16 %v250
    %v289 = vunpack.c.l.b16 %v251
    %v290 = vunpack.c.l.b16 %v252
    %v291 = vunpack.c.l.b16 %v253
    %v292 = vunpack.c.l.b16 %v254
    %v293 = vunpack.c.l.b16 %v255
    %v294 = vunpack.c.l.b16 %v256
    %v295 = vunpack.c.l.b16 %v257
    %v296 = vunpack.c.l.b16 %v258
    %v297 = vunpack.c.l.b16 %v259
    %v298 = vunpack.c.l.b16 %v260
    %v299 = vunpack.c.l.b16 %v261
    %v300 = vpack.c.b16 %v285, %v284
    %v301 = vpack.c.b16 %v287, %v286
    %v302 = vpack.c.b16 %v289, %v288
    %v303 = vpack.c.b16 %v291, %v290
    %v304 = vpack.c.b16 %v293, %v292
    %v305 = vpack.c.b16 %v295, %v294
    %v306 = vpack.c.b16 %v297, %v296
    %v307 = vpack.c.b16 %v299, %v298
    %316 = vmatprep.subr.bf16.mxu0 0
    %317 = vmatpush1.bf16.msra.mxu0 %v300
    %318 = vmatprep.subr.bf16.mxu0 0
    %319 = vmatpush1.bf16.msra.mxu0 %v301
    %320 = vmatprep.subr.bf16.mxu0 0
    %321 = vmatpush1.bf16.msra.mxu0 %v302
    %322 = vmatprep.subr.bf16.mxu0 0
    %323 = vmatpush1.bf16.msra.mxu0 %v303
    %324 = vmatprep.subr.bf16.mxu0 0
    %325 = vmatpush1.bf16.msra.mxu0 %v304
    %326 = vmatprep.subr.bf16.mxu0 0
    %327 = vmatpush1.bf16.msra.mxu0 %v305
    %328 = vmatprep.subr.bf16.mxu0 0
    %329 = vmatpush1.bf16.msra.mxu0 %v306
    %330 = vmatprep.subr.bf16.mxu0 0
    %331 = vmatpush1.bf16.msra.mxu0 %v307
    %332 = vmatprep.subr.bf16.mxu0 0
    %333 = vmatpush1.bf16.msra.mxu0 0
    %334 = vmatprep.subr.bf16.mxu0 0
    %335 = vmatpush1.bf16.msra.mxu0 0
    %336 = vmatprep.subr.bf16.mxu0 0
    %337 = vmatpush1.bf16.msra.mxu0 0
    %338 = vmatprep.subr.bf16.mxu0 0
    %339 = vmatpush1.bf16.msra.mxu0 0
    %340 = vmatprep.subr.bf16.mxu0 0
    %341 = vmatpush1.bf16.msra.mxu0 0
    %342 = vmatprep.subr.bf16.mxu0 0
    %343 = vmatpush1.bf16.msra.mxu0 0
    %344 = vmatprep.subr.bf16.mxu0 0
    %345 = vmatpush1.bf16.msra.mxu0 0
    %346 = vmatprep.subr.bf16.mxu0 0
    %347 = vmatpush1.bf16.msra.mxu0 0
    %348 = vmatprep.mubr.bf16.mxu0 0
    %349 = vmatmul.mubr.bf16.gmra.mrb[0].mxu0 %v266
    %v350 = vpop.f32.mrb[0].mxu0
    %v351 = vadd.f32 %v238, %v350
    %v352 = vpop.f32.mrb[0].mxu0
    %v353 = vpop.f32.mrb[0].mxu0
    %v354 = vadd.f32 %v242, %v353
    %v355 = vpop.f32.mrb[0].mxu0
    %356 = vdwg.mxu0
    %v357 = vadd.f32 %v85, %v351
    %v358 = vadd.f32 %v86, %v354
    %v359 = vpack.c.bf16 %v358, %v357
    %s360 = scalar_lea.vmem [#allocation7], 64
    %v361 = vld [vmem:[%s360] sm:$0xf]
    %v362 = vld [vmem:[%s360 + $0x4] sm:$0xf]
    %v363 = vld [vmem:[%s360 + $0x8] sm:$0xf]
    %v364 = vld [vmem:[%s360 + $0xc] sm:$0xf]
    %v365 = vld [vmem:[%s360 + $0x10] sm:$0xf]
    %v366 = vld [vmem:[%s360 + $0x14] sm:$0xf]
    %v367 = vld [vmem:[%s360 + $0x18] sm:$0xf]
    %v368 = vld [vmem:[%s360 + $0x1c] sm:$0xf]
    %v369 = vld [vmem:[%s360 + $0x20] sm:$0xf]
    %v370 = vld [vmem:[%s360 + $0x24] sm:$0xf]
    %v371 = vld [vmem:[%s360 + $0x28] sm:$0xf]
    %v372 = vld [vmem:[%s360 + $0x2c] sm:$0xf]
    %v373 = vld [vmem:[%s360 + $0x30] sm:$0xf]
    %v374 = vld [vmem:[%s360 + $0x34] sm:$0xf]
    %v375 = vld [vmem:[%s360 + $0x38] sm:$0xf]
    %v376 = vld [vmem:[%s360 + $0x3c] sm:$0xf]
    %v393 = vunpack.c.l.b16 %v361
    %v394 = vunpack.c.l.b16 %v362
    %v395 = vunpack.c.l.b16 %v363
    %v396 = vunpack.c.l.b16 %v364
    %v397 = vunpack.c.l.b16 %v365
    %v398 = vunpack.c.l.b16 %v366
    %v399 = vunpack.c.l.b16 %v367
    %v400 = vunpack.c.l.b16 %v368
    %v401 = vunpack.c.l.b16 %v369
    %v402 = vunpack.c.l.b16 %v370
    %v403 = vunpack.c.l.b16 %v371
    %v404 = vunpack.c.l.b16 %v372
    %v405 = vunpack.c.l.b16 %v373
    %v406 = vunpack.c.l.b16 %v374
    %v407 = vunpack.c.l.b16 %v375
    %v408 = vunpack.c.l.b16 %v376
    %v409 = vpack.c.b16 %v394, %v393
    %v410 = vpack.c.b16 %v396, %v395
    %v411 = vpack.c.b16 %v398, %v397
    %v412 = vpack.c.b16 %v400, %v399
    %v413 = vpack.c.b16 %v402, %v401
    %v414 = vpack.c.b16 %v404, %v403
    %v415 = vpack.c.b16 %v406, %v405
    %v416 = vpack.c.b16 %v408, %v407
    %425 = vmatprep.subr.bf16.mxu0 0
    %426 = vmatpush1.bf16.msra.mxu0 %v409
    %427 = vmatprep.subr.bf16.mxu0 0
    %428 = vmatpush1.bf16.msra.mxu0 %v410
    %429 = vmatprep.subr.bf16.mxu0 0
    %430 = vmatpush1.bf16.msra.mxu0 %v411
    %431 = vmatprep.subr.bf16.mxu0 0
    %432 = vmatpush1.bf16.msra.mxu0 %v412
    %433 = vmatprep.subr.bf16.mxu0 0
    %434 = vmatpush1.bf16.msra.mxu0 %v413
    %435 = vmatprep.subr.bf16.mxu0 0
    %436 = vmatpush1.bf16.msra.mxu0 %v414
    %437 = vmatprep.subr.bf16.mxu0 0
    %438 = vmatpush1.bf16.msra.mxu0 %v415
    %439 = vmatprep.subr.bf16.mxu0 0
    %440 = vmatpush1.bf16.msra.mxu0 %v416
    %441 = vmatprep.subr.bf16.mxu0 0
    %442 = vmatpush1.bf16.msra.mxu0 0
    %443 = vmatprep.subr.bf16.mxu0 0
    %444 = vmatpush1.bf16.msra.mxu0 0
    %445 = vmatprep.subr.bf16.mxu0 0
    %446 = vmatpush1.bf16.msra.mxu0 0
    %447 = vmatprep.subr.bf16.mxu0 0
    %448 = vmatpush1.bf16.msra.mxu0 0
    %449 = vmatprep.subr.bf16.mxu0 0
    %450 = vmatpush1.bf16.msra.mxu0 0
    %451 = vmatprep.subr.bf16.mxu0 0
    %452 = vmatpush1.bf16.msra.mxu0 0
    %453 = vmatprep.subr.bf16.mxu0 0
    %454 = vmatpush1.bf16.msra.mxu0 0
    %455 = vmatprep.subr.bf16.mxu0 0
    %456 = vmatpush1.bf16.msra.mxu0 0
    %457 = vmatprep.mubr.bf16.mxu0 0
    %458 = vmatmul.mubr.bf16.gmra.mrb[0].mxu0 %v359
    %v459 = vpop.f32.mrb[0].mxu0
    %v460 = vadd.f32 %v240, %v459
    %v461 = vpop.f32.mrb[0].mxu0
    %v462 = vpop.f32.mrb[0].mxu0
    %v463 = vadd.f32 %v244, %v462
    %v464 = vpop.f32.mrb[0].mxu0
    %465 = vdwg.mxu0
    %v466 = vadd.f32 %v357, %v460
    %v467 = vadd.f32 %v358, %v463
    %v468 = vlaneseq
    %v469 = vand.u32 %v468, 127
    %vm470 = vcmp.lt.s32.totalorder %v469, 32
    %471 = vadd.xlane.f32.xlu0 %v466
    %v472 = vpop.xlane.xlu0 %471
    %473 = vadd.xlane.f32.xlu0 %v467
    %v474 = vpop.xlane.xlu0 %473
    %v475 = vmul.f32 %v472, 0.03125
    %v476 = vmul.f32 %v474, 0.03125
    %v477 = vsub.f32 %v466, %v475
    %v478 = vsub.f32 %v467, %v476
    %v479 = vsel %vm470, 1, 0
    %vm480 = vcmp.eq.s32.totalorder %v479, 1
    %v481 = vsel %vm480, %v477, 0.0
    %v482 = vsel %vm480, %v478, 0.0
    %v483 = vmul.f32 %v481, %v481
    %v484 = vmul.f32 %v482, %v482
    %485 = vadd.xlane.f32.xlu0 %v483
    %v486 = vpop.xlane.xlu0 %485
    %487 = vadd.xlane.f32.xlu0 %v484
    %v488 = vpop.xlane.xlu0 %487
    %v489 = vmul.f32 %v486, 0.032258064
    %v490 = vmul.f32 %v488, 0.032258064
    %v491 = vrsqrt.pop %v489
    %v492 = vmul.f32 %v489, %v491
    %vm493 = vcmp.eq.f32.partialorder %v489, inf
    %v494 = vsel %vm493, %v489, %v492
    %vm495 = vcmp.eq.f32.partialorder %v489, 0.0
    %v496 = vand.u32 %v489, 2147483648
    %v497 = vsel %vm495, %v496, %v494
    %v498 = vrsqrt.pop %v490
    %v499 = vmul.f32 %v490, %v498
    %vm500 = vcmp.eq.f32.partialorder %v490, inf
    %v501 = vsel %vm500, %v490, %v499
    %vm502 = vcmp.eq.f32.partialorder %v490, 0.0
    %v503 = vand.u32 %v490, 2147483648
    %v504 = vsel %vm502, %v503, %v501
    %v505 = vadd.f32 %v497, 1e-06
    %v506 = vadd.f32 %v504, 1e-06
    %v507 = vrcp.pop %v505
    %v508 = vmul.f32 1.0, %v507
    %v509 = vrcp.pop %v506
    %v510 = vmul.f32 1.0, %v509
    %v511 = vld [vmem:[%s5] sm:$0x1]
    %v513 = vlaneseq
    %v514 = vshrl.u32 %v513, 7
    %v515 = vsub.s32 0, %v514
    %v516 = vrot.slane %v511, %v515
    %v518 = vmul.f32 %v516, %v481
    %v519 = vmul.f32 %v516, %v482
    %v520 = vmul.f32 %v518, %v508
    %v521 = vmul.f32 %v519, %v510
    %v522 = vld [vmem:[%s6] sm:$0x1]
    %v524 = vlaneseq
    %v525 = vshrl.u32 %v524, 7
    %v526 = vsub.s32 0, %v525
    %v527 = vrot.slane %v522, %v526
    %v529 = vadd.f32 %v520, %v527
    %v530 = vadd.f32 %v521, %v527
    %531 = vst [vmem:[#allocation10] sm:$0xff] %v529
    %532 = vst [vmem:[#allocation10 + $0x8] sm:$0xff] %v530
    // Predicated region
    $region46: #{tpu_custom_call.1} parent=1 // pred_check
      _
    $region47: #{tpu_custom_call.1} parent=1 // pred_check_branch
      %534 = sbr.rel (0) target = $region49
    $region48: #{tpu_custom_call.1} parent=1 // pred_region
      %s536 = ssub.s32 256, 256
      %537 = vsyncadd [#allocation4], %s536
      %s538 = sshll.u32 [#allocation10], 4
      %s539 = int_to_ptr.vmem [resolvable:$true] %s538
      %544 = dma.vmem_to_hbm [thread:$0]  %s539, 256, %s7, [#allocation4], 128, 128, 8
    $region49: #{tpu_custom_call.1} parent=1 // pred_fallthru
      _
    // Predicated region
    $region50: #{tpu_custom_call.1} parent=1 // pred_check
      _
    $region51: #{tpu_custom_call.1} parent=1 // pred_check_branch
      %546 = sbr.rel (0) target = $region53
    $region52: #{tpu_custom_call.1} parent=1 // pred_region
      %547 = dma.done [#allocation4], 256
    $region53: #{tpu_custom_call.1} parent=1 // pred_fallthru
      _
    %548 = vsyncpa [#allocation3], 1
    %549 = vsyncpa [#allocation6], 1
    %550 = vsyncpa [#allocation9], 1
    %551 = vsyncpa [#allocation4], 1

</llo_original>
